<compile_context>
chip_gen: v5e
topology: v5e:2x2
jax: 0.10.0
libtpu: 0.0.40
codegen_flags: <defaults>
</compile_context>

<pallas_src>
import jax
import jax.numpy as jnp
import numpy as np
from jax import lax
from jax.experimental import pallas as pl
from jax.experimental.pallas import tpu as pltpu

GN_GROUPS = 16
GN_EPS = 1e-5


def conv_gn_silu_kernel(p_ref, w_ref, gamma_ref, beta_ref, pool_ref, o_ref):
    """Fused conv (single im2col matmul) + GroupNorm(16) + SiLU for one batch element.

    p_ref:     (1, KKC1, HW)  bf16  im2col patches, tap/channel-major, pixel-minor
    w_ref:     (C2, KKC1)     bf16  flattened conv weights ((kh, kw, c1) ordering)
    gamma_ref: (C2, 1)        f32   GroupNorm scale
    beta_ref:  (C2, 1)        f32   GroupNorm shift
    pool_ref:  (C2, C2)       f32   group-membership pooling matrix (1 iff same group)
    o_ref:     (1, C2, HW)    f32   output, flattened NCHW (lane-dense when HW % 128 == 0)
    """
    _, C2, HW = o_ref.shape
    cpg = C2 // GN_GROUPS
    inv_n = 1.0 / float(HW * cpg)

    # ---- convolution: single MXU matmul, f32 accumulation ---------------------------
    # (C2, KKC1) @ (KKC1, HW) -> (C2, HW)
    acc = jnp.dot(w_ref[...], p_ref[0], preferred_element_type=jnp.float32)

    # ---- GroupNorm(16, C2): single pass over acc (sum + sum of squares) -------------
    ch_sum = jnp.sum(acc, axis=1, keepdims=True)                         # (C2, 1)
    ch_sq = jnp.sum(acc * acc, axis=1, keepdims=True)                    # (C2, 1)
    # spread group statistics back to every channel with tiny constant matmuls
    mean_c = jnp.dot(pool_ref[...], ch_sum,
                     preferred_element_type=jnp.float32) * inv_n         # (C2, 1)
    msq_c = jnp.dot(pool_ref[...], ch_sq,
                    preferred_element_type=jnp.float32) * inv_n          # (C2, 1)
    var_c = jnp.maximum(msq_c - mean_c * mean_c, 0.0)                    # (C2, 1)
    rstd_c = lax.rsqrt(var_c + GN_EPS)                                   # (C2, 1)

    scale_c = rstd_c * gamma_ref[...]                                    # (C2, 1)
    shift_c = beta_ref[...] - mean_c * scale_c                           # (C2, 1)
    y = acc * scale_c + shift_c                                          # (C2, HW) one FMA

    # ---- SiLU (sigmoid on the EUP, mul on the VPU) -----------------------------------
    y = y * jax.nn.sigmoid(y)

    o_ref[0] = y.astype(o_ref.dtype)


def conv_gn(x_nchw, w_hwio, gamma, beta, *, stride=1, dilation=1, padding=None):
    """Conv_GN forward (Conv2d no-bias -> GroupNorm(16) -> SiLU). stride=1/dilation=1/g=1."""
    assert stride == 1 and dilation == 1
    K = w_hwio.shape[0]
    if padding is None:
        padding = K // 2  # autopad(k, None, 1)

    N, C1, H, W = x_nchw.shape
    C2 = w_hwio.shape[-1]
    assert C2 % GN_GROUPS == 0
    HW = H * W
    KKC1 = K * K * C1

    # ---- im2col directly from NCHW (no layout transposes), cast to bf16 --------------
    x_pad = jnp.pad(x_nchw, ((0, 0), (0, 0), (padding, padding), (padding, padding)))
    cols = [x_pad[:, :, kh:kh + H, kw:kw + W]          # each (N, C1, H, W)
            for kh in range(K) for kw in range(K)]
    patches = (jnp.concatenate(cols, axis=1)            # (N, K*K*C1, H, W), (kh,kw,c1) order
               .reshape(N, KKC1, HW)
               .astype(jnp.bfloat16))

    # weights: HWIO (K,K,C1,C2) -> (C2, K*K*C1) with matching (kh,kw,c1) ordering
    w_t = jnp.transpose(w_hwio, (3, 0, 1, 2)).reshape(C2, KKC1).astype(jnp.bfloat16)

    gamma_c = gamma.reshape(C2, 1).astype(jnp.float32)
    beta_c = beta.reshape(C2, 1).astype(jnp.float32)

    # group-pooling matrix: pool[i, j] = 1 iff channels i and j belong to the same group
    cpg = C2 // GN_GROUPS
    ch = jnp.arange(C2) // cpg
    pool = (ch[:, None] == ch[None, :]).astype(jnp.float32)              # (C2, C2)

    cost = pl.CostEstimate(
        flops=int(2 * N * C2 * KKC1 * HW + 8 * N * C2 * HW),
        transcendentals=int(N * C2 * HW + N * C2),
        bytes_accessed=int(N * KKC1 * HW * 2 + C2 * KKC1 * 2 + N * C2 * HW * 4),
    )

    out_flat = pl.pallas_call(
        conv_gn_silu_kernel,
        out_shape=jax.ShapeDtypeStruct((N, C2, HW), jnp.float32),
        grid_spec=pltpu.PrefetchScalarGridSpec(
            num_scalar_prefetch=0,
            grid=(N,),
            in_specs=[
                pl.BlockSpec((1, KKC1, HW), lambda n: (n, 0, 0)),
                pl.BlockSpec((C2, KKC1), lambda n: (0, 0)),
                pl.BlockSpec((C2, 1), lambda n: (0, 0)),
                pl.BlockSpec((C2, 1), lambda n: (0, 0)),
                pl.BlockSpec((C2, C2), lambda n: (0, 0)),
            ],
            out_specs=pl.BlockSpec((1, C2, HW), lambda n: (n, 0, 0)),
        ),
        compiler_params=pltpu.CompilerParams(
            dimension_semantics=("parallel",),
            vmem_limit_bytes=32 * 1024 * 1024,
        ),
        cost_estimate=cost,
    )(patches, w_t, gamma_c, beta_c, pool)

    # output is already channel-major (NCHW) -> only a free metadata reshape remains
    return out_flat.reshape(N, C2, H, W)


def reference(x_nchw, w_hwio, gamma, beta, padding):
    """Pure-JAX reference matching PyTorch Conv2d(bias=False) + GroupNorm(16) + SiLU."""
    x = jnp.transpose(x_nchw, (0, 2, 3, 1))
    y = lax.conv_general_dilated(
        x, w_hwio, window_strides=(1, 1),
        padding=[(padding, padding), (padding, padding)],
        dimension_numbers=("NHWC", "HWIO", "NHWC"),
        precision=lax.Precision.HIGHEST)
    N, H, W, C2 = y.shape
    g = GN_GROUPS
    yg = y.reshape(N, H, W, g, C2 // g)
    mean = jnp.mean(yg, axis=(1, 2, 4), keepdims=True)
    var = jnp.mean((yg - mean) ** 2, axis=(1, 2, 4), keepdims=True)
    yn = ((yg - mean) * lax.rsqrt(var + GN_EPS)).reshape(N, H, W, C2)
    yn = yn * gamma + beta
    out = yn * jax.nn.sigmoid(yn)
    return jnp.transpose(out, (0, 3, 1, 2))


if __name__ == "__main__":
    # Small shapes consistent with the module: c1=4, c2=32 (divisible by 16 for GN), k=3.
    N, C1, H, W = 2, 4, 16, 16
    C2, K = 32, 3

    key = jax.random.PRNGKey(0)
    k1, k2, k3, k4 = jax.random.split(key, 4)
    x = jax.random.normal(k1, (N, C1, H, W), jnp.float32)
    w = jax.random.normal(k2, (K, K, C1, C2), jnp.float32) * 0.1   # HWIO
    gamma = 1.0 + 0.1 * jax.random.normal(k3, (C2,), jnp.float32)
    beta = 0.1 * jax.random.normal(k4, (C2,), jnp.float32)

    out = conv_gn(x, w, gamma, beta)
    jax.block_until_ready(out)
    assert out.shape == (N, C2, H, W)

    ref = reference(x, w, gamma, beta, K // 2)
    np.testing.assert_allclose(np.asarray(out), np.asarray(ref), atol=2e-2, rtol=2e-2)

    print("KERNEL_OK")
</pallas_src>

<mosaic_0001>
module attributes {stable_mosaic.version = 11 : i64} {
  func.func @conv_gn_silu_kernel(%arg0: i32, %arg1: memref<1x36x256xbf16, #tpu.memory_space<vmem>>, %arg2: memref<32x36xbf16, #tpu.memory_space<vmem>>, %arg3: memref<32x1xf32, #tpu.memory_space<vmem>>, %arg4: memref<32x1xf32, #tpu.memory_space<vmem>>, %arg5: memref<32x32xf32, #tpu.memory_space<vmem>>, %arg6: memref<1x32x256xf32, #tpu.memory_space<vmem>>) attributes {dimension_semantics = [#tpu.dimension_semantics<parallel>], iteration_bounds = array<i64: 2>, scalar_prefetch = 0 : i64, scratch_operands = 0 : i64, tpu.core_type = #tpu.core_type<tc>, window_params = [{transform_indices = @transform_0, window_bounds = array<i64: 1, 36, 256>}, {pipeline_mode = #tpu.pipeline_mode<synchronous>, transform_indices = @transform_1, window_bounds = array<i64: 32, 36>}, {pipeline_mode = #tpu.pipeline_mode<synchronous>, transform_indices = @transform_2, window_bounds = array<i64: 32, 1>}, {pipeline_mode = #tpu.pipeline_mode<synchronous>, transform_indices = @transform_3, window_bounds = array<i64: 32, 1>}, {pipeline_mode = #tpu.pipeline_mode<synchronous>, transform_indices = @transform_4, window_bounds = array<i64: 32, 32>}, {transform_indices = @transform_5, window_bounds = array<i64: 1, 32, 256>}]} {
    %c0 = arith.constant 0 : index
    %c0_0 = arith.constant 0 : index
    %0 = vector.load %arg2[%c0, %c0_0] : memref<32x36xbf16, #tpu.memory_space<vmem>>, vector<32x36xbf16>
    %c0_1 = arith.constant 0 : index
    %c0_2 = arith.constant 0 : index
    %c0_3 = arith.constant 0 : index
    %1 = vector.load %arg1[%c0_1, %c0_2, %c0_3] : memref<1x36x256xbf16, #tpu.memory_space<vmem>>, vector<1x36x256xbf16>
    %2 = vector.shape_cast %1 : vector<1x36x256xbf16> to vector<36x256xbf16>
    %cst = arith.constant dense<0.000000e+00> : vector<32x256xf32>
    %3 = tpu.matmul %0, %2, %cst {dimension_numbers = #tpu.dot_dimension_numbers<[1], [0], [0], [1], [0, 0, 1, 1], [], []>} : vector<32x36xbf16>, vector<36x256xbf16>, vector<32x256xf32> -> vector<32x256xf32>
    %cst_4 = arith.constant dense<0.000000e+00> : vector<32xf32>
    %4 = vector.multi_reduction <add>, %3, %cst_4 [1] : vector<32x256xf32> to vector<32xf32>
    %5 = vector.shape_cast %4 : vector<32xf32> to vector<32x1xf32>
    %6 = arith.mulf %3, %3 : vector<32x256xf32>
    %cst_5 = arith.constant dense<0.000000e+00> : vector<32xf32>
    %7 = vector.multi_reduction <add>, %6, %cst_5 [1] : vector<32x256xf32> to vector<32xf32>
    %8 = vector.shape_cast %7 : vector<32xf32> to vector<32x1xf32>
    %c0_6 = arith.constant 0 : index
    %c0_7 = arith.constant 0 : index
    %9 = vector.load %arg5[%c0_6, %c0_7] : memref<32x32xf32, #tpu.memory_space<vmem>>, vector<32x32xf32>
    %cst_8 = arith.constant dense<0.000000e+00> : vector<32x1xf32>
    %10 = tpu.matmul %9, %5, %cst_8 {dimension_numbers = #tpu.dot_dimension_numbers<[1], [0], [0], [1], [0, 0, 1, 1], [], []>} : vector<32x32xf32>, vector<32x1xf32>, vector<32x1xf32> -> vector<32x1xf32>
    %cst_9 = arith.constant 0.001953125 : f32
    %11 = vector.broadcast %cst_9 : f32 to vector<32x1xf32>
    %12 = arith.mulf %10, %11 : vector<32x1xf32>
    %c0_10 = arith.constant 0 : index
    %c0_11 = arith.constant 0 : index
    %13 = vector.load %arg5[%c0_10, %c0_11] : memref<32x32xf32, #tpu.memory_space<vmem>>, vector<32x32xf32>
    %cst_12 = arith.constant dense<0.000000e+00> : vector<32x1xf32>
    %14 = tpu.matmul %13, %8, %cst_12 {dimension_numbers = #tpu.dot_dimension_numbers<[1], [0], [0], [1], [0, 0, 1, 1], [], []>} : vector<32x32xf32>, vector<32x1xf32>, vector<32x1xf32> -> vector<32x1xf32>
    %cst_13 = arith.constant 0.001953125 : f32
    %15 = vector.broadcast %cst_13 : f32 to vector<32x1xf32>
    %16 = arith.mulf %14, %15 : vector<32x1xf32>
    %17 = arith.mulf %12, %12 : vector<32x1xf32>
    %18 = arith.subf %16, %17 : vector<32x1xf32>
    %cst_14 = arith.constant 0.000000e+00 : f32
    %19 = vector.broadcast %cst_14 : f32 to vector<32x1xf32>
    %20 = arith.maximumf %18, %19 : vector<32x1xf32>
    %cst_15 = arith.constant 9.99999974E-6 : f32
    %21 = vector.broadcast %cst_15 : f32 to vector<32x1xf32>
    %22 = arith.addf %20, %21 : vector<32x1xf32>
    %23 = math.rsqrt %22 : vector<32x1xf32>
    %c0_16 = arith.constant 0 : index
    %c0_17 = arith.constant 0 : index
    %24 = vector.load %arg3[%c0_16, %c0_17] : memref<32x1xf32, #tpu.memory_space<vmem>>, vector<32x1xf32>
    %25 = arith.mulf %23, %24 : vector<32x1xf32>
    %c0_18 = arith.constant 0 : index
    %c0_19 = arith.constant 0 : index
    %26 = vector.load %arg4[%c0_18, %c0_19] : memref<32x1xf32, #tpu.memory_space<vmem>>, vector<32x1xf32>
    %27 = arith.mulf %12, %25 : vector<32x1xf32>
    %28 = arith.subf %26, %27 : vector<32x1xf32>
    %29 = vector.broadcast %25 : vector<32x1xf32> to vector<32x256xf32>
    %30 = arith.mulf %3, %29 : vector<32x256xf32>
    %31 = vector.broadcast %28 : vector<32x1xf32> to vector<32x256xf32>
    %32 = arith.addf %30, %31 : vector<32x256xf32>
    %33 = arith.negf %32 : vector<32x256xf32>
    %34 = math.exp %33 : vector<32x256xf32>
    %cst_20 = arith.constant 1.000000e+00 : f32
    %35 = vector.broadcast %cst_20 : f32 to vector<32x256xf32>
    %36 = arith.addf %35, %34 : vector<32x256xf32>
    %37 = arith.divf %35, %36 : vector<32x256xf32>
    %38 = arith.mulf %32, %37 : vector<32x256xf32>
    %c0_21 = arith.constant 0 : index
    %c0_22 = arith.constant 0 : index
    %c0_23 = arith.constant 0 : index
    %39 = vector.load %arg6[%c0_21, %c0_22, %c0_23] : memref<1x32x256xf32, #tpu.memory_space<vmem>>, vector<1x32x256xf32>
    %40 = vector.shape_cast %39 : vector<1x32x256xf32> to vector<32x256xf32>
    %41 = vector.shape_cast %38 : vector<32x256xf32> to vector<1x32x256xf32>
    tpu.vector_store %arg6[%c0_21, %c0_22, %c0_23], %41 {strides = array<i32>} : memref<1x32x256xf32, #tpu.memory_space<vmem>>, vector<1x32x256xf32>,
    return
  }
  func.func @transform_0(%arg0: i32) -> (i32, i32, i32) {
    %c0_i32 = arith.constant 0 : i32
    %c0_i32_0 = arith.constant 0 : i32
    %c0_i32_1 = arith.constant 0 : i32
    return %arg0, %c0_i32, %c0_i32_0 : i32, i32, i32
  }
  func.func @transform_1(%arg0: i32) -> (i32, i32) {
    %c0_i32 = arith.constant 0 : i32
    %c0_i32_0 = arith.constant 0 : i32
    %c0_i32_1 = arith.constant 0 : i32
    return %c0_i32, %c0_i32_0 : i32, i32
  }
  func.func @transform_2(%arg0: i32) -> (i32, i32) {
    %c0_i32 = arith.constant 0 : i32
    %c0_i32_0 = arith.constant 0 : i32
    %c0_i32_1 = arith.constant 0 : i32
    return %c0_i32, %c0_i32_0 : i32, i32
  }
  func.func @transform_3(%arg0: i32) -> (i32, i32) {
    %c0_i32 = arith.constant 0 : i32
    %c0_i32_0 = arith.constant 0 : i32
    %c0_i32_1 = arith.constant 0 : i32
    return %c0_i32, %c0_i32_0 : i32, i32
  }
  func.func @transform_4(%arg0: i32) -> (i32, i32) {
    %c0_i32 = arith.constant 0 : i32
    %c0_i32_0 = arith.constant 0 : i32
    %c0_i32_1 = arith.constant 0 : i32
    return %c0_i32, %c0_i32_0 : i32, i32
  }
  func.func @transform_5(%arg0: i32) -> (i32, i32, i32) {
    %c0_i32 = arith.constant 0 : i32
    %c0_i32_0 = arith.constant 0 : i32
    %c0_i32_1 = arith.constant 0 : i32
    return %arg0, %c0_i32, %c0_i32_0 : i32, i32, i32
  }
}

</mosaic_0001>

<llo_original>
// kernel: tpu_custom_call.1
$region0: #{tpu_custom_call.1}
  #allocation0 [shape = 'u32[]', space=smem, size = 0x4, offset = 0x4, fixed_abs, tag = 'smem constant byte address 0x4 - core index']
  #allocation1 [shape = 'u32[72,128]{1,0:T(1,128)}', space=vmem, size = 0x9000, scoped, tag = 'internal scratch']
  %s0 = inlined_call_operand.vmem [shape: bf16[2,36,256], index: 0, kind: input, shape index: {}]
  %s1 = inlined_call_operand.vmem [shape: bf16[32,36], index: 1, kind: input, shape index: {}]
  %s2 = inlined_call_operand.vmem [shape: f32[32,1], index: 2, kind: input, shape index: {}]
  %s3 = inlined_call_operand.vmem [shape: f32[32,1], index: 3, kind: input, shape index: {}]
  %s4 = inlined_call_operand.vmem [shape: f32[32,32], index: 4, kind: input, shape index: {}]
  %s5 = inlined_call_operand.hbm [shape: f32[2,32,256], index: 5, kind: output, shape index: {}]
  %s6 = sld [smem:[#allocation0]]
  $region53: #{tpu_custom_call.1} parent=0
    _
  %s8 = ssub.s32 1, %s6
  %s9 = scalar_select 0, %s8, %s6
  $region1: #{tpu_custom_call.1} parent=0
    #allocation2 [shape = 'u8[65536]{0}', space=vmem, size = 0x10000, scoped, tag = 'output window, operand 0']
    #allocation3 [shape = 's32[2]{0}', space=sflag, size = 0x8, scoped, tag = 'scoped memory for tpu_custom_call.1']
    %10 = vsyncpa [#allocation3], 0
    %s11 = scalar_lea.sflag [#allocation3], 1
    %12 = vsyncpa %s11, 0
    loop: start=0, step=1, limit=4
    $region2: #{tpu_custom_call.1} parent=1 // loop_pre_header
      _
    $region3: #{tpu_custom_call.1} parent=1 // loop_header
      %s14 = sphi 0, %s18
      %p15 = scmp.ge.s32.totalorder %s14, 4
      %s24 = sphi 0, %s26
      %s27 = sphi 0, %s24
      %s28 = sphi 0, %s27
      %s44 = sphi 0, %s28
      %s48 = sphi 0, %s48
      %s50 = sphi 0, %s48
      %s51 = sphi 0, %s50
      %s65 = sphi 0, %s51
      %s69 = sphi 0, %s69
      %s71 = sphi 0, %s69
      %s72 = sphi 0, %s71
      %s86 = sphi 0, %s72
      %s90 = sphi 0, %s90
      %s92 = sphi 0, %s90
      %s93 = sphi 0, %s92
      %s107 = sphi 0, %s93
      %s111 = sphi 0, %s111
      %s113 = sphi 0, %s111
      %s114 = sphi 0, %s113
      %s128 = sphi 0, %s114
      %s134 = sphi 0, %s136
      %s137 = sphi 0, %s134
      %s138 = sphi 0, %s137
      %s154 = sphi 0, %s138
    $region4: #{tpu_custom_call.1} parent=1 // loop_header_branch
      %17 = sbr.rel (%p15) target = $region8
    $region5: #{tpu_custom_call.1} parent=1 // loop_body
      %s19 = ssub.s32 %s14, 1
      %s20 = ssub.s32 %s14, 2
      %s21 = sadd.s32 %s14, 1
      %s22 = ssub.s32 %s14, %s21
      %p23 = scmp.eq.s32.totalorder %s22, 0
      %s25 = sadd.s32 %s24, 1
      %s26 = scalar_select %p23, %s24, %s25
      %p29 = pneg %p23
      %p30 = scmp.eq.s32.totalorder %s14, 1
      %p31 = por %p29, %p30
      %p32 = scmp.ne.s32.totalorder %s24, %s27
      %p33 = scmp.eq.s32.totalorder %s14, 0
      %p34 = por %p32, %p33
      %p35 = scmp.ne.s32.totalorder %s24, %s27
      %p36 = scmp.eq.s32.totalorder %s19, 1
      %p37 = por %p35, %p36
      %p38 = scmp.ne.s32.totalorder %s27, %s28
      %p39 = scmp.eq.s32.totalorder %s19, 0
      %p40 = por %p38, %p39
      %p41 = scmp.ne.s32.totalorder %s27, %s28
      %p42 = scmp.eq.s32.totalorder %s20, 1
      %p43 = por %p41, %p42
      %p45 = scmp.ne.s32.totalorder %s28, %s44
      %p46 = scmp.eq.s32.totalorder %s20, 0
      %p47 = por %p45, %p46
      %s49 = sadd.s32 %s48, 1
      %p52 = scmp.eq.s32.totalorder %s14, 1
      %p53 = scmp.ne.s32.totalorder %s48, %s50
      %p54 = scmp.eq.s32.totalorder %s14, 0
      %p55 = por %p53, %p54
      %p56 = scmp.ne.s32.totalorder %s48, %s50
      %p57 = scmp.eq.s32.totalorder %s19, 1
      %p58 = por %p56, %p57
      %p59 = scmp.ne.s32.totalorder %s50, %s51
      %p60 = scmp.eq.s32.totalorder %s19, 0
      %p61 = por %p59, %p60
      %p62 = scmp.ne.s32.totalorder %s50, %s51
      %p63 = scmp.eq.s32.totalorder %s20, 1
      %p64 = por %p62, %p63
      %p66 = scmp.ne.s32.totalorder %s51, %s65
      %p67 = scmp.eq.s32.totalorder %s20, 0
      %p68 = por %p66, %p67
      %s70 = sadd.s32 %s69, 1
      %p73 = scmp.eq.s32.totalorder %s14, 1
      %p74 = scmp.ne.s32.totalorder %s69, %s71
      %p75 = scmp.eq.s32.totalorder %s14, 0
      %p76 = por %p74, %p75
      %p77 = scmp.ne.s32.totalorder %s69, %s71
      %p78 = scmp.eq.s32.totalorder %s19, 1
      %p79 = por %p77, %p78
      %p80 = scmp.ne.s32.totalorder %s71, %s72
      %p81 = scmp.eq.s32.totalorder %s19, 0
      %p82 = por %p80, %p81
      %p83 = scmp.ne.s32.totalorder %s71, %s72
      %p84 = scmp.eq.s32.totalorder %s20, 1
      %p85 = por %p83, %p84
      %p87 = scmp.ne.s32.totalorder %s72, %s86
      %p88 = scmp.eq.s32.totalorder %s20, 0
      %p89 = por %p87, %p88
      %s91 = sadd.s32 %s90, 1
      %p94 = scmp.eq.s32.totalorder %s14, 1
      %p95 = scmp.ne.s32.totalorder %s90, %s92
      %p96 = scmp.eq.s32.totalorder %s14, 0
      %p97 = por %p95, %p96
      %p98 = scmp.ne.s32.totalorder %s90, %s92
      %p99 = scmp.eq.s32.totalorder %s19, 1
      %p100 = por %p98, %p99
      %p101 = scmp.ne.s32.totalorder %s92, %s93
      %p102 = scmp.eq.s32.totalorder %s19, 0
      %p103 = por %p101, %p102
      %p104 = scmp.ne.s32.totalorder %s92, %s93
      %p105 = scmp.eq.s32.totalorder %s20, 1
      %p106 = por %p104, %p105
      %p108 = scmp.ne.s32.totalorder %s93, %s107
      %p109 = scmp.eq.s32.totalorder %s20, 0
      %p110 = por %p108, %p109
      %s112 = sadd.s32 %s111, 1
      %p115 = scmp.eq.s32.totalorder %s14, 1
      %p116 = scmp.ne.s32.totalorder %s111, %s113
      %p117 = scmp.eq.s32.totalorder %s14, 0
      %p118 = por %p116, %p117
      %p119 = scmp.ne.s32.totalorder %s111, %s113
      %p120 = scmp.eq.s32.totalorder %s19, 1
      %p121 = por %p119, %p120
      %p122 = scmp.ne.s32.totalorder %s113, %s114
      %p123 = scmp.eq.s32.totalorder %s19, 0
      %p124 = por %p122, %p123
      %p125 = scmp.ne.s32.totalorder %s113, %s114
      %p126 = scmp.eq.s32.totalorder %s20, 1
      %p127 = por %p125, %p126
      %p129 = scmp.ne.s32.totalorder %s114, %s128
      %p130 = scmp.eq.s32.totalorder %s20, 0
      %p131 = por %p129, %p130
      %s132 = ssub.s32 %s14, %s21
      %p133 = scmp.eq.s32.totalorder %s132, 0
      %s135 = sadd.s32 %s134, 1
      %s136 = scalar_select %p133, %s134, %s135
      %p139 = pneg %p133
      %p140 = scmp.eq.s32.totalorder %s14, 1
      %p141 = por %p139, %p140
      %p142 = scmp.ne.s32.totalorder %s134, %s137
      %p143 = scmp.eq.s32.totalorder %s14, 0
      %p144 = por %p142, %p143
      %p145 = scmp.ne.s32.totalorder %s134, %s137
      %p146 = scmp.eq.s32.totalorder %s19, 1
      %p147 = por %p145, %p146
      %p148 = scmp.ne.s32.totalorder %s137, %s138
      %p149 = scmp.eq.s32.totalorder %s19, 0
      %p150 = por %p148, %p149
      %p151 = scmp.ne.s32.totalorder %s137, %s138
      %p152 = scmp.eq.s32.totalorder %s20, 1
      %p153 = por %p151, %p152
      %p155 = scmp.ne.s32.totalorder %s138, %s154
      %p156 = scmp.eq.s32.totalorder %s20, 0
      %p157 = por %p155, %p156
      %p158 = scmp.le.s32.totalorder 1, %s14
      %p159 = scmp.lt.s32.totalorder %s14, 3
      %p160 = pnand %p158, %p159
      %p161 = pneg %p160
      // Predicated region
      $region9: #{tpu_custom_call.1} parent=5 // pred_check
        _
      $region10: #{tpu_custom_call.1} parent=5 // pred_check_branch
        %163 = sbr.rel (%p160) target = $region12
      $region11: #{tpu_custom_call.1} parent=5 // pred_region
        %s164 = ssub.s32 %s14, 1
        // Predicated region
        $region13: #{tpu_custom_call.1} parent=11 // pred_check
          %p165 = pneg %p61
        $region14: #{tpu_custom_call.1} parent=11 // pred_check_branch
          %167 = sbr.rel (%p165) target = $region16
        $region15: #{tpu_custom_call.1} parent=11 // pred_region
          _
        $region16: #{tpu_custom_call.1} parent=11 // pred_fallthru
          _
        // Predicated region
        $region17: #{tpu_custom_call.1} parent=11 // pred_check
          %p168 = pneg %p82
        $region18: #{tpu_custom_call.1} parent=11 // pred_check_branch
          %170 = sbr.rel (%p168) target = $region20
        $region19: #{tpu_custom_call.1} parent=11 // pred_region
          _
        $region20: #{tpu_custom_call.1} parent=11 // pred_fallthru
          _
        // Predicated region
        $region21: #{tpu_custom_call.1} parent=11 // pred_check
          %p171 = pneg %p103
        $region22: #{tpu_custom_call.1} parent=11 // pred_check_branch
          %173 = sbr.rel (%p171) target = $region24
        $region23: #{tpu_custom_call.1} parent=11 // pred_region
          _
        $region24: #{tpu_custom_call.1} parent=11 // pred_fallthru
          _
        // Predicated region
        $region25: #{tpu_custom_call.1} parent=11 // pred_check
          %p174 = pneg %p124
        $region26: #{tpu_custom_call.1} parent=11 // pred_check_branch
          %176 = sbr.rel (%p174) target = $region28
        $region27: #{tpu_custom_call.1} parent=11 // pred_region
          _
        $region28: #{tpu_custom_call.1} parent=11 // pred_fallthru
          _
      $region12: #{tpu_custom_call.1} parent=5 // pred_fallthru
        _
      %p177 = scmp.lt.s32.totalorder %s14, 2
      // Predicated region
      $region29: #{tpu_custom_call.1} parent=5 // pred_check
        %p178 = pneg %p177
      $region30: #{tpu_custom_call.1} parent=5 // pred_check_branch
        %180 = sbr.rel (%p178) target = $region32
      $region31: #{tpu_custom_call.1} parent=5 // pred_region
        // Predicated region
        $region33: #{tpu_custom_call.1} parent=31 // pred_check
          %p181 = pneg %p34
        $region34: #{tpu_custom_call.1} parent=31 // pred_check_branch
          %183 = sbr.rel (%p181) target = $region36
        $region35: #{tpu_custom_call.1} parent=31 // pred_region
          %p184 = scmp.lt.s32.totalorder %s14, 1
          %s185 = scalar_select %p184, %s14, 1
          %s186 = smul.addr %s185, 10
          %s187 = smul.addr %s186, 4
          %s188 = scalar_lea.vmem %s0, %s187
        $region36: #{tpu_custom_call.1} parent=31 // pred_fallthru
          _
      $region32: #{tpu_custom_call.1} parent=5 // pred_fallthru
        _
      %p189 = scmp.le.s32.totalorder 1, %s14
      %p190 = scmp.lt.s32.totalorder %s14, 3
      %p191 = pnand %p189, %p190
      %p192 = pneg %p191
      // Predicated region
      $region37: #{tpu_custom_call.1} parent=5 // pred_check
        _
      $region38: #{tpu_custom_call.1} parent=5 // pred_check_branch
        %194 = sbr.rel (%p191) target = $region40
      $region39: #{tpu_custom_call.1} parent=5 // pred_region
        %s195 = ssub.s32 %s14, 1
        %p196 = scmp.lt.s32.totalorder %s19, 1
        %s197 = scalar_select %p196, %s19, 1
        %s198 = smul.addr %s197, 10
        %s199 = smul.addr %s198, 4
        %s200 = scalar_lea.vmem %s0, %s199
        %p201 = pneg %p40
        %p202 = pneg %p37
        %p203 = pneg %p61
        %p204 = pneg %p58
        %p205 = pneg %p82
        %p206 = pneg %p79
        %p207 = pneg %p103
        %p208 = pneg %p100
        %p209 = pneg %p124
        %p210 = pneg %p121
        %p211 = pneg %p150
        %p212 = pneg %p147
        %s213 = sand.u32 %s137, 1
        %s214 = scalar_lea.sflag [#allocation3], %s213
        %s215 = sand.u32 %s137, 1
        %s216 = smul.addr %s215, 64
        %s217 = scalar_lea.vmem [#allocation2], %s216
        %p218 = scmp.lt.s32.totalorder %s19, 1
        %s219 = scalar_select %p218, %s19, 1
        %s220 = smul.addr %s219, 10
        %s221 = smul.addr %s220, 4
        %s222 = scalar_lea.vmem %s0, %s221
        %v224 = vld [vmem:[%s1] sm:$0xf]
        %v225 = vld [vmem:[%s1 + $0x4] sm:$0xf]
        %v226 = vld [vmem:[%s1 + $0x8] sm:$0xf]
        %v227 = vld [vmem:[%s1 + $0xc] sm:$0xf]
        %v228 = vld [vmem:[%s222] sm:$0xff]
        %v229 = vld [vmem:[%s222 + $0x8] sm:$0xff]
        %v230 = vld [vmem:[%s222 + $0x10] sm:$0xff]
        %v231 = vld [vmem:[%s222 + $0x18] sm:$0xff]
        %v232 = vld [vmem:[%s222 + $0x20] sm:$0x33]
        %v237 = vunpack.c.l.b16 %v224
        %v238 = vunpack.c.l.b16 %v225
        %v239 = vunpack.c.l.b16 %v226
        %v240 = vunpack.c.l.b16 %v227
        %v241 = vpack.c.b16 %v238, %v237
        %v242 = vpack.c.b16 %v240, %v239
        %v248 = vunpack.c.l.b16 %v228
        %v249 = vunpack.c.h.b16 %v228
        %v250 = vunpack.c.l.b16 %v229
        %v251 = vunpack.c.h.b16 %v229
        %v252 = vunpack.c.l.b16 %v230
        %v253 = vunpack.c.h.b16 %v230
        %v254 = vunpack.c.l.b16 %v231
        %v255 = vunpack.c.h.b16 %v231
        %v256 = vunpack.c.l.b16 %v232
        %v257 = vunpack.c.h.b16 %v232
        %v258 = vpack.c.b16 %v250, %v248
        %v259 = vpack.c.b16 %v251, %v249
        %v260 = vpack.c.b16 %v254, %v252
        %v261 = vpack.c.b16 %v255, %v253
        %v262 = vpack.c.b16 %v256, %v256
        %v263 = vpack.c.b16 %v257, %v257
        %vm268 = vcmask 293888
        %v270 = vsel %vm268, %v241, 0
        %v273 = vsel %vm268, %v242, 0
        %vm275 = vcmask 1041408
        %v277 = vsel %vm275, %v262, 0
        %v280 = vsel %vm275, %v263, 0
        %282 = vmatpush.bf16.msra.mxu0 0
        %283 = vmatpush.bf16.msra.mxu0 0
        %284 = vmatpush.bf16.msra.mxu0 0
        %285 = vmatpush.bf16.msra.mxu0 0
        %286 = vmatpush.bf16.msra.mxu0 0
        %287 = vmatpush.bf16.msra.mxu0 %v277
        %288 = vmatpush.bf16.msra.mxu0 %v260
        %289 = vmatpush.bf16.msra.mxu0 %v258
        %290 = vmatmul.bf16.gmra.mxu0 %v270
        %v291 = vpop.f32.mrf.mxu0
        %v292 = vadd.f32 0.0, %v291
        %v293 = vpop.f32.mrf.mxu0
        %v294 = vadd.f32 0.0, %v293
        %295 = vmatmul.bf16.gmra.mxu0 %v273
        %v296 = vpop.f32.mrf.mxu0
        %v297 = vadd.f32 0.0, %v296
        %v298 = vpop.f32.mrf.mxu0
        %v299 = vadd.f32 0.0, %v298
        %300 = vdwg.mxu0
        %301 = vmatpush.bf16.msra.mxu0 0
        %302 = vmatpush.bf16.msra.mxu0 0
        %303 = vmatpush.bf16.msra.mxu0 0
        %304 = vmatpush.bf16.msra.mxu0 0
        %305 = vmatpush.bf16.msra.mxu0 0
        %306 = vmatpush.bf16.msra.mxu0 %v280
        %307 = vmatpush.bf16.msra.mxu0 %v261
        %308 = vmatpush.bf16.msra.mxu0 %v259
        %309 = vmatmul.bf16.gmra.mxu0 %v270
        %v310 = vpop.f32.mrf.mxu0
        %v311 = vadd.f32 0.0, %v310
        %v312 = vpop.f32.mrf.mxu0
        %v313 = vadd.f32 0.0, %v312
        %314 = vmatmul.bf16.gmra.mxu0 %v273
        %v315 = vpop.f32.mrf.mxu0
        %v316 = vadd.f32 0.0, %v315
        %v317 = vpop.f32.mrf.mxu0
        %v318 = vadd.f32 0.0, %v317
        %319 = vdwg.mxu0
        %v320 = vadd.f32 %v292, %v311
        %321 = vadd.xlane.f32.xlu0 %v320
        %v322 = vpop.xlane.xlu0 %321
        %v323 = vadd.f32 %v294, %v313
        %324 = vadd.xlane.f32.xlu0 %v323
        %v325 = vpop.xlane.xlu0 %324
        %v326 = vadd.f32 %v297, %v316
        %327 = vadd.xlane.f32.xlu0 %v326
        %v328 = vpop.xlane.xlu0 %327
        %v329 = vadd.f32 %v299, %v318
        %330 = vadd.xlane.f32.xlu0 %v329
        %v331 = vpop.xlane.xlu0 %330
        %v332 = vmul.f32 %v292, %v292
        %v333 = vmul.f32 %v311, %v311
        %v334 = vmul.f32 %v294, %v294
        %v335 = vmul.f32 %v313, %v313
        %v336 = vmul.f32 %v297, %v297
        %v337 = vmul.f32 %v316, %v316
        %v338 = vmul.f32 %v299, %v299
        %v339 = vmul.f32 %v318, %v318
        %v340 = vadd.f32 %v332, %v333
        %341 = vadd.xlane.f32.xlu0 %v340
        %v342 = vpop.xlane.xlu0 %341
        %v343 = vadd.f32 %v334, %v335
        %344 = vadd.xlane.f32.xlu0 %v343
        %v345 = vpop.xlane.xlu0 %344
        %v346 = vadd.f32 %v336, %v337
        %347 = vadd.xlane.f32.xlu0 %v346
        %v348 = vpop.xlane.xlu0 %347
        %v349 = vadd.f32 %v338, %v339
        %350 = vadd.xlane.f32.xlu0 %v349
        %v351 = vpop.xlane.xlu0 %350
        %v352 = vld [vmem:[%s4] sm:$0xff]
        %v353 = vld [vmem:[%s4 + $0x8] sm:$0xff]
        %v354 = vld [vmem:[%s4 + $0x10] sm:$0xff]
        %v355 = vld [vmem:[%s4 + $0x18] sm:$0xff]
        %vm356 = vcmask 261120
        %v358 = vsel %vm356, %v352, 0
        %v361 = vsel %vm356, %v353, 0
        %v364 = vsel %vm356, %v354, 0
        %v367 = vsel %vm356, %v355, 0
        %369 = vmatpush.msra.mxu0 0.0
        %370 = vmatpush.msra.mxu0 0.0
        %371 = vmatpush.msra.mxu0 0.0
        %372 = vmatpush.msra.mxu0 0.0
        %373 = vmatpush.msra.mxu0 0.0
        %374 = vmatpush.msra.mxu0 0.0
        %375 = vmatpush.msra.mxu0 0.0
        %376 = vmatpush.msra.mxu0 0.0
        %377 = vmatpush.msra.mxu0 0.0
        %378 = vmatpush.msra.mxu0 0.0
        %379 = vmatpush.msra.mxu0 0.0
        %380 = vmatpush.msra.mxu0 0.0
        %381 = vmatpush.msra.mxu0 %v331
        %382 = vmatpush.msra.mxu0 %v328
        %383 = vmatpush.msra.mxu0 %v325
        %384 = vmatpush.msra.mxu0 %v322
        %385 = vmatmul.f32.gmra.mxu0 %v358
        %v386 = vpop.f32.mrf.mxu0
        %v387 = vadd.f32 0.0, %v386
        %388 = vmatmul.f32.gmra.mxu0 %v361
        %v389 = vpop.f32.mrf.mxu0
        %v390 = vadd.f32 0.0, %v389
        %391 = vmatmul.f32.gmra.mxu0 %v364
        %v392 = vpop.f32.mrf.mxu0
        %v393 = vadd.f32 0.0, %v392
        %394 = vmatmul.f32.gmra.mxu0 %v367
        %v395 = vpop.f32.mrf.mxu0
        %v396 = vadd.f32 0.0, %v395
        %397 = vdwg.mxu0
        %v398 = vmul.f32 %v387, 0.001953125
        %v399 = vmul.f32 %v390, 0.001953125
        %v400 = vmul.f32 %v393, 0.001953125
        %v401 = vmul.f32 %v396, 0.001953125
        %402 = vmatpush.msra.mxu0 0.0
        %403 = vmatpush.msra.mxu0 0.0
        %404 = vmatpush.msra.mxu0 0.0
        %405 = vmatpush.msra.mxu0 0.0
        %406 = vmatpush.msra.mxu0 0.0
        %407 = vmatpush.msra.mxu0 0.0
        %408 = vmatpush.msra.mxu0 0.0
        %409 = vmatpush.msra.mxu0 0.0
        %410 = vmatpush.msra.mxu0 0.0
        %411 = vmatpush.msra.mxu0 0.0
        %412 = vmatpush.msra.mxu0 0.0
        %413 = vmatpush.msra.mxu0 0.0
        %414 = vmatpush.msra.mxu0 %v351
        %415 = vmatpush.msra.mxu0 %v348
        %416 = vmatpush.msra.mxu0 %v345
        %417 = vmatpush.msra.mxu0 %v342
        %418 = vmatmul.f32.gmra.mxu0 %v358
        %v419 = vpop.f32.mrf.mxu0
        %v420 = vadd.f32 0.0, %v419
        %421 = vmatmul.f32.gmra.mxu0 %v361
        %v422 = vpop.f32.mrf.mxu0
        %v423 = vadd.f32 0.0, %v422
        %424 = vmatmul.f32.gmra.mxu0 %v364
        %v425 = vpop.f32.mrf.mxu0
        %v426 = vadd.f32 0.0, %v425
        %427 = vmatmul.f32.gmra.mxu0 %v367
        %v428 = vpop.f32.mrf.mxu0
        %v429 = vadd.f32 0.0, %v428
        %430 = vdwg.mxu0
        %v431 = vmul.f32 %v420, 0.001953125
        %v432 = vmul.f32 %v423, 0.001953125
        %v433 = vmul.f32 %v426, 0.001953125
        %v434 = vmul.f32 %v429, 0.001953125
        %v435 = vmul.f32 %v398, %v398
        %v436 = vmul.f32 %v399, %v399
        %v437 = vmul.f32 %v400, %v400
        %v438 = vmul.f32 %v401, %v401
        %v439 = vsub.f32 %v431, %v435
        %v440 = vsub.f32 %v432, %v436
        %v441 = vsub.f32 %v433, %v437
        %v442 = vsub.f32 %v434, %v438
        %v443 = vmax.f32 %v439, 0.0
        %v444 = vmax.f32 %v440, 0.0
        %v445 = vmax.f32 %v441, 0.0
        %v446 = vmax.f32 %v442, 0.0
        %v447 = vadd.f32 %v443, 1e-05
        %v448 = vadd.f32 %v444, 1e-05
        %v449 = vadd.f32 %v445, 1e-05
        %v450 = vadd.f32 %v446, 1e-05
        %v451 = vrsqrt.pop %v447
        %v452 = vmul.f32 %v451, %v447
        %v453 = vmul.f32 %v452, %v451
        %v454 = vmul.f32 0.5, %v453
        %v455 = vsub.f32 1.5, %v454
        %v456 = vmul.f32 %v451, %v455
        %vm457 = vweird.f32 %v447
        %vm458 = vweird.f32 %v451
        %vm459 = vmor %vm457, %vm458
        %v460 = vsel %vm459, %v451, %v456
        %v461 = vrsqrt.pop %v448
        %v462 = vmul.f32 %v461, %v448
        %v463 = vmul.f32 %v462, %v461
        %v464 = vmul.f32 0.5, %v463
        %v465 = vsub.f32 1.5, %v464
        %v466 = vmul.f32 %v461, %v465
        %vm467 = vweird.f32 %v448
        %vm468 = vweird.f32 %v461
        %vm469 = vmor %vm467, %vm468
        %v470 = vsel %vm469, %v461, %v466
        %v471 = vrsqrt.pop %v449
        %v472 = vmul.f32 %v471, %v449
        %v473 = vmul.f32 %v472, %v471
        %v474 = vmul.f32 0.5, %v473
        %v475 = vsub.f32 1.5, %v474
        %v476 = vmul.f32 %v471, %v475
        %vm477 = vweird.f32 %v449
        %vm478 = vweird.f32 %v471
        %vm479 = vmor %vm477, %vm478
        %v480 = vsel %vm479, %v471, %v476
        %v481 = vrsqrt.pop %v450
        %v482 = vmul.f32 %v481, %v450
        %v483 = vmul.f32 %v482, %v481
        %v484 = vmul.f32 0.5, %v483
        %v485 = vsub.f32 1.5, %v484
        %v486 = vmul.f32 %v481, %v485
        %vm487 = vweird.f32 %v450
        %vm488 = vweird.f32 %v481
        %vm489 = vmor %vm487, %vm488
        %v490 = vsel %vm489, %v481, %v486
        %v491 = vld [vmem:[%s2] sm:$0xff]
        %v492 = vld [vmem:[%s2 + $0x8] sm:$0xff]
        %v493 = vld [vmem:[%s2 + $0x10] sm:$0xff]
        %v494 = vld [vmem:[%s2 + $0x18] sm:$0xff]
        %v495 = vmul.f32 %v460, %v491
        %v496 = vmul.f32 %v470, %v492
        %v497 = vmul.f32 %v480, %v493
        %v498 = vmul.f32 %v490, %v494
        %v499 = vld [vmem:[%s3] sm:$0xff]
        %v500 = vld [vmem:[%s3 + $0x8] sm:$0xff]
        %v501 = vld [vmem:[%s3 + $0x10] sm:$0xff]
        %v502 = vld [vmem:[%s3 + $0x18] sm:$0xff]
        %v503 = vmul.f32 %v398, %v495
        %v504 = vmul.f32 %v399, %v496
        %v505 = vmul.f32 %v400, %v497
        %v506 = vmul.f32 %v401, %v498
        %v507 = vsub.f32 %v499, %v503
        %v508 = vsub.f32 %v500, %v504
        %v509 = vsub.f32 %v501, %v505
        %v510 = vsub.f32 %v502, %v506
        %512 = vset.pattern.permute.xlu0 0
        %513 = vperm.xlu0 %512, %v495
        %v514 = vpop.permute.xlu0 %513
        %517 = vset.pattern.permute.xlu0 0
        %518 = vperm.xlu0 %517, %v496
        %v519 = vpop.permute.xlu0 %518
        %522 = vset.pattern.permute.xlu0 0
        %523 = vperm.xlu0 %522, %v497
        %v524 = vpop.permute.xlu0 %523
        %527 = vset.pattern.permute.xlu0 0
        %528 = vperm.xlu0 %527, %v498
        %v529 = vpop.permute.xlu0 %528
        %v531 = vmul.f32 %v292, %v514
        %v532 = vmul.f32 %v311, %v514
        %v533 = vmul.f32 %v294, %v519
        %v534 = vmul.f32 %v313, %v519
        %v535 = vmul.f32 %v297, %v524
        %v536 = vmul.f32 %v316, %v524
        %v537 = vmul.f32 %v299, %v529
        %v538 = vmul.f32 %v318, %v529
        %540 = vset.pattern.permute.xlu0 0
        %541 = vperm.xlu0 %540, %v507
        %v542 = vpop.permute.xlu0 %541
        %545 = vset.pattern.permute.xlu0 0
        %546 = vperm.xlu0 %545, %v508
        %v547 = vpop.permute.xlu0 %546
        %550 = vset.pattern.permute.xlu0 0
        %551 = vperm.xlu0 %550, %v509
        %v552 = vpop.permute.xlu0 %551
        %555 = vset.pattern.permute.xlu0 0
        %556 = vperm.xlu0 %555, %v510
        %v557 = vpop.permute.xlu0 %556
        %v559 = vadd.f32 %v531, %v542
        %v560 = vadd.f32 %v532, %v542
        %v561 = vadd.f32 %v533, %v547
        %v562 = vadd.f32 %v534, %v547
        %v563 = vadd.f32 %v535, %v552
        %v564 = vadd.f32 %v536, %v552
        %v565 = vadd.f32 %v537, %v557
        %v566 = vadd.f32 %v538, %v557
        %v567 = vxor.u32 %v559, 2147483648
        %v568 = vxor.u32 %v560, 2147483648
        %v569 = vxor.u32 %v561, 2147483648
        %v570 = vxor.u32 %v562, 2147483648
        %v571 = vxor.u32 %v563, 2147483648
        %v572 = vxor.u32 %v564, 2147483648
        %v573 = vxor.u32 %v565, 2147483648
        %v574 = vxor.u32 %v566, 2147483648
        %v575 = vmul.f32 %v567, 1.442695
        %v576 = vpow.pop %v575
        %v577 = vmul.f32 %v568, 1.442695
        %v578 = vpow.pop %v577
        %v579 = vmul.f32 %v569, 1.442695
        %v580 = vpow.pop %v579
        %v581 = vmul.f32 %v570, 1.442695
        %v582 = vpow.pop %v581
        %v583 = vmul.f32 %v571, 1.442695
        %v584 = vpow.pop %v583
        %v585 = vmul.f32 %v572, 1.442695
        %v586 = vpow.pop %v585
        %v587 = vmul.f32 %v573, 1.442695
        %v588 = vpow.pop %v587
        %v589 = vmul.f32 %v574, 1.442695
        %v590 = vpow.pop %v589
        %v591 = vadd.f32 %v576, 1.0
        %v592 = vadd.f32 %v578, 1.0
        %v593 = vadd.f32 %v580, 1.0
        %v594 = vadd.f32 %v582, 1.0
        %v595 = vadd.f32 %v584, 1.0
        %v596 = vadd.f32 %v586, 1.0
        %v597 = vadd.f32 %v588, 1.0
        %v598 = vadd.f32 %v590, 1.0
        %v599 = vrcp.pop %v591
        %v600 = vmul.f32 %v591, %v599
        %v601 = vsub.f32 1.0, %v600
        %v602 = vmul.f32 %v599, %v601
        %v603 = vadd.f32 %v599, %v602
        %vm604 = vweird.f32 %v591
        %vm605 = vweird.f32 %v599
        %vm606 = vmor %vm604, %vm605
        %v607 = vsel %vm606, %v599, %v603
        %v608 = vand.u32 2147483647, %v591
        %vm609 = vcmp.eq.f32.partialorder %v608, 8.507059e+37
        %v610 = vand.u32 %v591, 2147483648
        %v611 = vor.u32 1.1754944e-38, %v610
        %v612 = vsel %vm609, %v611, %v607
        %v613 = vmul.f32 1.0, %v612
        %v614 = vrcp.pop %v592
        %v615 = vmul.f32 %v592, %v614
        %v616 = vsub.f32 1.0, %v615
        %v617 = vmul.f32 %v614, %v616
        %v618 = vadd.f32 %v614, %v617
        %vm619 = vweird.f32 %v592
        %vm620 = vweird.f32 %v614
        %vm621 = vmor %vm619, %vm620
        %v622 = vsel %vm621, %v614, %v618
        %v623 = vand.u32 2147483647, %v592
        %vm624 = vcmp.eq.f32.partialorder %v623, 8.507059e+37
        %v625 = vand.u32 %v592, 2147483648
        %v626 = vor.u32 1.1754944e-38, %v625
        %v627 = vsel %vm624, %v626, %v622
        %v628 = vmul.f32 1.0, %v627
        %v629 = vrcp.pop %v593
        %v630 = vmul.f32 %v593, %v629
        %v631 = vsub.f32 1.0, %v630
        %v632 = vmul.f32 %v629, %v631
        %v633 = vadd.f32 %v629, %v632
        %vm634 = vweird.f32 %v593
        %vm635 = vweird.f32 %v629
        %vm636 = vmor %vm634, %vm635
        %v637 = vsel %vm636, %v629, %v633
        %v638 = vand.u32 2147483647, %v593
        %vm639 = vcmp.eq.f32.partialorder %v638, 8.507059e+37
        %v640 = vand.u32 %v593, 2147483648
        %v641 = vor.u32 1.1754944e-38, %v640
        %v642 = vsel %vm639, %v641, %v637
        %v643 = vmul.f32 1.0, %v642
        %v644 = vrcp.pop %v594
        %v645 = vmul.f32 %v594, %v644
        %v646 = vsub.f32 1.0, %v645
        %v647 = vmul.f32 %v644, %v646
        %v648 = vadd.f32 %v644, %v647
        %vm649 = vweird.f32 %v594
        %vm650 = vweird.f32 %v644
        %vm651 = vmor %vm649, %vm650
        %v652 = vsel %vm651, %v644, %v648
        %v653 = vand.u32 2147483647, %v594
        %vm654 = vcmp.eq.f32.partialorder %v653, 8.507059e+37
        %v655 = vand.u32 %v594, 2147483648
        %v656 = vor.u32 1.1754944e-38, %v655
        %v657 = vsel %vm654, %v656, %v652
        %v658 = vmul.f32 1.0, %v657
        %v659 = vrcp.pop %v595
        %v660 = vmul.f32 %v595, %v659
        %v661 = vsub.f32 1.0, %v660
        %v662 = vmul.f32 %v659, %v661
        %v663 = vadd.f32 %v659, %v662
        %vm664 = vweird.f32 %v595
        %vm665 = vweird.f32 %v659
        %vm666 = vmor %vm664, %vm665
        %v667 = vsel %vm666, %v659, %v663
        %v668 = vand.u32 2147483647, %v595
        %vm669 = vcmp.eq.f32.partialorder %v668, 8.507059e+37
        %v670 = vand.u32 %v595, 2147483648
        %v671 = vor.u32 1.1754944e-38, %v670
        %v672 = vsel %vm669, %v671, %v667
        %v673 = vmul.f32 1.0, %v672
        %v674 = vrcp.pop %v596
        %v675 = vmul.f32 %v596, %v674
        %v676 = vsub.f32 1.0, %v675
        %v677 = vmul.f32 %v674, %v676
        %v678 = vadd.f32 %v674, %v677
        %vm679 = vweird.f32 %v596
        %vm680 = vweird.f32 %v674
        %vm681 = vmor %vm679, %vm680
        %v682 = vsel %vm681, %v674, %v678
        %v683 = vand.u32 2147483647, %v596
        %vm684 = vcmp.eq.f32.partialorder %v683, 8.507059e+37
        %v685 = vand.u32 %v596, 2147483648
        %v686 = vor.u32 1.1754944e-38, %v685
        %v687 = vsel %vm684, %v686, %v682
        %v688 = vmul.f32 1.0, %v687
        %v689 = vrcp.pop %v597
        %v690 = vmul.f32 %v597, %v689
        %v691 = vsub.f32 1.0, %v690
        %v692 = vmul.f32 %v689, %v691
        %v693 = vadd.f32 %v689, %v692
        %vm694 = vweird.f32 %v597
        %vm695 = vweird.f32 %v689
        %vm696 = vmor %vm694, %vm695
        %v697 = vsel %vm696, %v689, %v693
        %v698 = vand.u32 2147483647, %v597
        %vm699 = vcmp.eq.f32.partialorder %v698, 8.507059e+37
        %v700 = vand.u32 %v597, 2147483648
        %v701 = vor.u32 1.1754944e-38, %v700
        %v702 = vsel %vm699, %v701, %v697
        %v703 = vmul.f32 1.0, %v702
        %v704 = vrcp.pop %v598
        %v705 = vmul.f32 %v598, %v704
        %v706 = vsub.f32 1.0, %v705
        %v707 = vmul.f32 %v704, %v706
        %v708 = vadd.f32 %v704, %v707
        %vm709 = vweird.f32 %v598
        %vm710 = vweird.f32 %v704
        %vm711 = vmor %vm709, %vm710
        %v712 = vsel %vm711, %v704, %v708
        %v713 = vand.u32 2147483647, %v598
        %vm714 = vcmp.eq.f32.partialorder %v713, 8.507059e+37
        %v715 = vand.u32 %v598, 2147483648
        %v716 = vor.u32 1.1754944e-38, %v715
        %v717 = vsel %vm714, %v716, %v712
        %v718 = vmul.f32 1.0, %v717
        %v719 = vmul.f32 %v559, %v613
        %v720 = vmul.f32 %v560, %v628
        %v721 = vmul.f32 %v561, %v643
        %v722 = vmul.f32 %v562, %v658
        %v723 = vmul.f32 %v563, %v673
        %v724 = vmul.f32 %v564, %v688
        %v725 = vmul.f32 %v565, %v703
        %v726 = vmul.f32 %v566, %v718
        %727 = vst [vmem:[%s217] sm:$0xff] %v719
        %728 = vst [vmem:[%s217 + $0x8] sm:$0xff] %v720
        %729 = vst [vmem:[%s217 + $0x10] sm:$0xff] %v721
        %730 = vst [vmem:[%s217 + $0x18] sm:$0xff] %v722
        %731 = vst [vmem:[%s217 + $0x20] sm:$0xff] %v723
        %732 = vst [vmem:[%s217 + $0x28] sm:$0xff] %v724
        %733 = vst [vmem:[%s217 + $0x30] sm:$0xff] %v725
        %734 = vst [vmem:[%s217 + $0x38] sm:$0xff] %v726
        %s735 = sand.u32 %s137, 1
        %s736 = scalar_lea.sflag [#allocation3], %s735
        %s737 = sand.u32 %s137, 1
        %s738 = smul.addr %s737, 64
        %s739 = scalar_lea.vmem [#allocation2], %s738
        // Predicated region
        $region41: #{tpu_custom_call.1} parent=39 // pred_check
          %p740 = pneg %p147
        $region42: #{tpu_custom_call.1} parent=39 // pred_check_branch
          %742 = sbr.rel (%p740) target = $region44
        $region43: #{tpu_custom_call.1} parent=39 // pred_region
          %744 = vsyncadd %s736, 0
          %s745 = smul.addr %s19, 8
          %s746 = smul.addr %s745, 8
          %s747 = scalar_lea.hbm %s5, %s746
          %s748 = sshll.u32 %s739, 4
          %s749 = int_to_ptr.vmem [resolvable:$true] %s748
          %s750 = sshll.u32 %s747, 4
          %s751 = int_to_ptr.hbm [resolvable:$true] %s750
          %756 = dma.vmem_to_hbm [thread:$0]  %s749, 1024, %s751, %s736, 256, 256, 16
        $region44: #{tpu_custom_call.1} parent=39 // pred_fallthru
          _
      $region40: #{tpu_custom_call.1} parent=5 // pred_fallthru
        _
      %p757 = scmp.le.s32.totalorder 2, %s14
      // Predicated region
      $region45: #{tpu_custom_call.1} parent=5 // pred_check
        %p758 = pneg %p757
      $region46: #{tpu_custom_call.1} parent=5 // pred_check_branch
        %760 = sbr.rel (%p758) target = $region48
      $region47: #{tpu_custom_call.1} parent=5 // pred_region
        %s761 = ssub.s32 %s14, 2
        // Predicated region
        $region49: #{tpu_custom_call.1} parent=47 // pred_check
          %p762 = pneg %p153
        $region50: #{tpu_custom_call.1} parent=47 // pred_check_branch
          %764 = sbr.rel (%p762) target = $region52
        $region51: #{tpu_custom_call.1} parent=47 // pred_region
          %s765 = sand.u32 %s138, 1
          %s766 = scalar_lea.sflag [#allocation3], %s765
          %s767 = sand.u32 %s138, 1
          %s768 = smul.addr %s767, 64
          %s769 = scalar_lea.vmem [#allocation2], %s768
          %771 = dma.done %s766, 1024
        $region52: #{tpu_custom_call.1} parent=47 // pred_fallthru
          _
      $region48: #{tpu_custom_call.1} parent=5 // pred_fallthru
        _
    $region6: #{tpu_custom_call.1} parent=1 // loop_footer
      %s18 = sadd.s32 1, %s14
    $region7: #{tpu_custom_call.1} parent=1 // loop_footer_branch
      %13 = sbr.rel target = $region3
    $region8: #{tpu_custom_call.1} parent=1 // loop_exit
      _
    %772 = vsyncpa [#allocation3], 1
    %s773 = scalar_lea.sflag [#allocation3], 1
    %774 = vsyncpa %s773, 1

</llo_original>
